<compile_context>
chip_gen: v5e
topology: v5e:2x2
jax: 0.10.0
libtpu: 0.0.40
codegen_flags: <defaults>
</compile_context>

<pallas_src>
import functools
import math

import jax
import jax.numpy as jnp
from jax.experimental import pallas as pl
from jax.experimental.pallas import tpu as pltpu


def _round_up(x: int, m: int) -> int:
    return ((x + m - 1) // m) * m


def _vmem_capacity_bytes() -> int:
    try:
        cap = getattr(pltpu.get_tpu_info(), "vmem_capacity_bytes", None)
        if cap:
            return int(cap)
    except Exception:
        pass
    return 64 * 1024 * 1024  # conservative default: v7x per-TensorCore VMEM


def _fused_mlp_kernel(*refs, num_layers: int, relu_flags, mxu_dtype):
    """Chained Linear(+ReLU) layers on one batch tile, all in VMEM.

    refs = (x_ref, w0_ref, b0_ref, w1_ref, b1_ref, ..., o_ref)
      x_ref : (TB, D0)          wI_ref: (DIb, DI1b) in mxu_dtype
      bI_ref: (1, DI1b) f32     o_ref : (TB, C)
    """
    x_ref = refs[0]
    o_ref = refs[-1]
    h = x_ref[...].astype(mxu_dtype)           # single cast of the input tile
    for li in range(num_layers):
        w = refs[1 + 2 * li][...]               # stored in mxu_dtype already
        b = refs[2 + 2 * li][...]               # f32
        h = jnp.dot(h, w, preferred_element_type=jnp.float32)   # MXU, f32 acc
        h = h + b                               # f32 bias add on the VPU
        if relu_flags[li]:
            h = jnp.maximum(h, 0.0)
        if li < num_layers - 1:
            h = h.astype(mxu_dtype)             # feed next MXU pass
    o_ref[...] = h.astype(o_ref.dtype)


class PallasMLP:
    """Mirrors MLP.__init__ parameter shapes and MLP.forward semantics."""

    def __init__(self, input_size, neuron_structure, num_classes, key,
                 mxu_dtype=jnp.bfloat16):
        # Default bf16 weights (bf16-native MXUs on v5e/v6e/v7x); pass
        # mxu_dtype=jnp.float32 for exact parity with the PyTorch reference.
        self.mxu_dtype = mxu_dtype
        self.num_classes = num_classes
        sizes = [input_size] + list(neuron_structure) + [num_classes]
        self.sizes = sizes
        self.num_layers = len(sizes) - 1

        # Block (VMEM) feature widths: hidden dims lane-padded to 128 (exact
        # zero padding), network input and num_classes left unpadded so the
        # wrapper never pads x or slices the output feature dim.
        blk = [sizes[0]] + [_round_up(s, 128) for s in sizes[1:-1]] + [sizes[-1]]
        self.blk_sizes = blk

        self.params = []          # unpadded f32 (W_t (in,out), b (out,)) reference
        self.padded_params = []   # (W_t_blk (in_b,out_b) mxu_dtype, b_blk (1,out_b) f32)
        for li in range(self.num_layers):
            din, dout = sizes[li], sizes[li + 1]
            key, kw, kb = jax.random.split(key, 3)
            bound = 1.0 / math.sqrt(din)        # nn.Linear default init
            w = jax.random.uniform(kw, (dout, din), jnp.float32, -bound, bound)
            b = jax.random.uniform(kb, (dout,), jnp.float32, -bound, bound)
            w_t = jnp.transpose(w)              # (in, out)
            self.params.append((w_t, b))

            din_b, dout_b = blk[li], blk[li + 1]
            w_blk = jnp.zeros((din_b, dout_b), mxu_dtype).at[:din, :dout].set(
                w_t.astype(mxu_dtype))
            b_blk = jnp.zeros((1, dout_b), jnp.float32).at[0, :dout].set(b)
            self.padded_params.append((w_blk, b_blk))

        self._vmem_cap = _vmem_capacity_bytes()
        self._weight_bytes = sum(
            w.size * w.dtype.itemsize + b.size * b.dtype.itemsize
            for w, b in self.padded_params)
        # Per-generation resident-weight budget, counting worst-case double
        # buffering (the Buffered(1) fast path halves the real footprint).
        assert 2 * self._weight_bytes < int(0.6 * self._vmem_cap), (
            "fused-MLP weights exceed this TPU generation's VMEM budget; "
            "use a tiled per-layer (tm,tn,tk) matmul kernel instead")

        self._single_buffer_weights = None   # resolved on first forward()

    # ---- VMEM footprint model (weights + I/O double buffers + activations) --
    def _vmem_footprint_bytes(self, tb, x_itemsize):
        fp = 2 * self._weight_bytes                                  # 2 bufs worst case
        fp += 2 * tb * _round_up(self.blk_sizes[0], 128) * x_itemsize   # x
        fp += 2 * tb * _round_up(self.blk_sizes[-1], 128) * 4           # out
        max_d = max(_round_up(d, 128) for d in self.blk_sizes)
        fp += 3 * tb * max_d * 4                                     # live h slabs
        return fp

    def _call(self, tb, bp, out_dtype, cost, vmem_limit, single_buffer_weights):
        nl = self.num_layers
        din = self.blk_sizes[0]
        ncls = self.blk_sizes[-1]
        wkw = ({"pipeline_mode": pl.Buffered(1)} if single_buffer_weights else {})

        in_specs = [pl.BlockSpec((tb, din), lambda i: (i, 0))]
        for w_blk, b_blk in self.padded_params:
            # Constant index_map -> weight/bias blocks stay resident across
            # batch tiles; Buffered(1) drops the useless second buffer.
            in_specs.append(pl.BlockSpec(w_blk.shape, lambda i: (0, 0), **wkw))
            in_specs.append(pl.BlockSpec(b_blk.shape, lambda i: (0, 0), **wkw))
        out_specs = pl.BlockSpec((tb, ncls), lambda i: (i, 0))

        kernel = functools.partial(
            _fused_mlp_kernel,
            num_layers=nl,
            relu_flags=tuple(li < nl - 1 for li in range(nl)),
            mxu_dtype=self.mxu_dtype)

        return pl.pallas_call(
            kernel,
            out_shape=jax.ShapeDtypeStruct((bp, ncls), out_dtype),
            grid=(bp // tb,),
            in_specs=in_specs,
            out_specs=out_specs,
            compiler_params=pltpu.CompilerParams(
                dimension_semantics=("parallel",),
                vmem_limit_bytes=vmem_limit),
            cost_estimate=cost,
        )

    def forward(self, x):
        B, din = x.shape
        assert din == self.sizes[0]
        ncls = self.blk_sizes[-1]

        # Batch tile: single step for small batches; exactly 2 steps for
        # 256 < bp <= 1024 (both v7x TensorCores busy); 512-row tiles beyond
        # that.  Shrink if the VMEM footprint would not fit.
        bp8 = _round_up(B, 8)
        if bp8 <= 256:
            tb = bp8
        elif bp8 <= 1024:
            tb = _round_up((bp8 + 1) // 2, 8)
        else:
            tb = 512
        budget = int(0.80 * self._vmem_cap)
        while tb > 8 and self._vmem_footprint_bytes(tb, x.dtype.itemsize) > budget:
            tb = max(8, _round_up(tb // 2, 8))
        bp = _round_up(B, tb)

        # No feature-dim padding of x (first weight's input dim is unpadded);
        # pad batch rows only when B is not a multiple of the tile.
        x_in = x if bp == B else jnp.pad(x, ((0, bp - B), (0, 0)))

        flat_params = []
        for w_blk, b_blk in self.padded_params:
            flat_params.extend([w_blk, b_blk])

        flops = sum(2 * bp * self.blk_sizes[li] * self.blk_sizes[li + 1]
                    for li in range(self.num_layers))
        bytes_accessed = (x_in.size * x_in.dtype.itemsize + bp * ncls * 4
                          + self._weight_bytes)
        cost = pl.CostEstimate(flops=flops, transcendentals=0,
                               bytes_accessed=bytes_accessed)

        vmem_limit = max(
            32 << 20,
            min(int(0.85 * self._vmem_cap),
                2 * self._vmem_footprint_bytes(tb, x.dtype.itemsize) + (4 << 20)))

        args = (x_in, *flat_params)
        if self._single_buffer_weights is None:
            try:
                out = self._call(tb, bp, x.dtype, cost, vmem_limit, True)(*args)
                out = jax.block_until_ready(out)
                self._single_buffer_weights = True
            except Exception:
                # pipeline_mode=pl.Buffered(1) rejected on this build; fall
                # back to default (double-buffered) weight specs.
                self._single_buffer_weights = False
                out = self._call(tb, bp, x.dtype, cost, vmem_limit, False)(*args)
        else:
            out = self._call(tb, bp, x.dtype, cost, vmem_limit,
                             self._single_buffer_weights)(*args)

        return out if bp == B else out[:B]


def reference_forward(params, x):
    for i, (w_t, b) in enumerate(params):
        x = x @ w_t + b
        if i < len(params) - 1:
            x = jnp.maximum(x, 0.0)
    return x


if __name__ == "__main__":
    key = jax.random.PRNGKey(0)
    key, kx, kp = jax.random.split(key, 3)

    batch = 8
    input_size = 64
    neuron_structure = [32, 16]
    num_classes = 10

    x = jax.random.normal(kx, (batch, input_size), jnp.float32)

    # Default perf path: bf16 weights on the MXU, f32 accumulation/epilogue.
    model_bf16 = PallasMLP(input_size, neuron_structure, num_classes, kp)
    out = jax.block_until_ready(model_bf16.forward(x))
    ref = reference_forward(model_bf16.params, x)
    assert out.shape == (batch, num_classes)
    assert jnp.allclose(out, ref, atol=5e-2, rtol=5e-2)   # bf16 weight quantization

    # Opt-in exact-parity path (f32 MXU) against the same f32 reference.
    model_f32 = PallasMLP(input_size, neuron_structure, num_classes, kp,
                          mxu_dtype=jnp.float32)
    out_f32 = jax.block_until_ready(model_f32.forward(x))
    assert jnp.allclose(out_f32, reference_forward(model_f32.params, x),
                        atol=1e-5, rtol=1e-5)

    print("KERNEL_OK")
</pallas_src>

<mosaic_0001>
module attributes {stable_mosaic.version = 11 : i64} {
  func.func @_fused_mlp_kernel(%arg0: i32, %arg1: memref<8x64xf32, #tpu.memory_space<vmem>>, %arg2: memref<64x128xbf16, #tpu.memory_space<vmem>>, %arg3: memref<1x128xf32, #tpu.memory_space<vmem>>, %arg4: memref<128x128xbf16, #tpu.memory_space<vmem>>, %arg5: memref<1x128xf32, #tpu.memory_space<vmem>>, %arg6: memref<128x10xbf16, #tpu.memory_space<vmem>>, %arg7: memref<1x10xf32, #tpu.memory_space<vmem>>, %arg8: memref<8x10xf32, #tpu.memory_space<vmem>>) attributes {dimension_semantics = [#tpu.dimension_semantics<parallel>], iteration_bounds = array<i64: 1>, scalar_prefetch = 0 : i64, scratch_operands = 0 : i64, tpu.core_type = #tpu.core_type<tc>, window_params = [{transform_indices = @transform_0, window_bounds = array<i64: 8, 64>}, {pipeline_mode = #tpu.pipeline_mode<synchronous>, transform_indices = @transform_1, window_bounds = array<i64: 64, 128>}, {pipeline_mode = #tpu.pipeline_mode<synchronous>, transform_indices = @transform_2, window_bounds = array<i64: 1, 128>}, {pipeline_mode = #tpu.pipeline_mode<synchronous>, transform_indices = @transform_3, window_bounds = array<i64: 128, 128>}, {pipeline_mode = #tpu.pipeline_mode<synchronous>, transform_indices = @transform_4, window_bounds = array<i64: 1, 128>}, {pipeline_mode = #tpu.pipeline_mode<synchronous>, transform_indices = @transform_5, window_bounds = array<i64: 128, 10>}, {pipeline_mode = #tpu.pipeline_mode<synchronous>, transform_indices = @transform_6, window_bounds = array<i64: 1, 10>}, {transform_indices = @transform_7, window_bounds = array<i64: 8, 10>}]} {
    %c0 = arith.constant 0 : index
    %c0_0 = arith.constant 0 : index
    %0 = vector.load %arg1[%c0, %c0_0] : memref<8x64xf32, #tpu.memory_space<vmem>>, vector<8x64xf32>
    %1 = arith.truncf %0 : vector<8x64xf32> to vector<8x64xbf16>
    %c0_1 = arith.constant 0 : index
    %c0_2 = arith.constant 0 : index
    %2 = vector.load %arg2[%c0_1, %c0_2] : memref<64x128xbf16, #tpu.memory_space<vmem>>, vector<64x128xbf16>
    %c0_3 = arith.constant 0 : index
    %c0_4 = arith.constant 0 : index
    %3 = vector.load %arg3[%c0_3, %c0_4] : memref<1x128xf32, #tpu.memory_space<vmem>>, vector<1x128xf32>
    %cst = arith.constant dense<0.000000e+00> : vector<8x128xf32>
    %4 = tpu.matmul %1, %2, %cst {dimension_numbers = #tpu.dot_dimension_numbers<[1], [0], [0], [1], [0, 0, 1, 1], [], []>} : vector<8x64xbf16>, vector<64x128xbf16>, vector<8x128xf32> -> vector<8x128xf32>
    %5 = vector.broadcast %3 : vector<1x128xf32> to vector<8x128xf32>
    %6 = arith.addf %4, %5 : vector<8x128xf32>
    %cst_5 = arith.constant 0.000000e+00 : f32
    %7 = vector.broadcast %cst_5 : f32 to vector<8x128xf32>
    %8 = arith.maximumf %6, %7 : vector<8x128xf32>
    %9 = arith.truncf %8 : vector<8x128xf32> to vector<8x128xbf16>
    %c0_6 = arith.constant 0 : index
    %c0_7 = arith.constant 0 : index
    %10 = vector.load %arg4[%c0_6, %c0_7] : memref<128x128xbf16, #tpu.memory_space<vmem>>, vector<128x128xbf16>
    %c0_8 = arith.constant 0 : index
    %c0_9 = arith.constant 0 : index
    %11 = vector.load %arg5[%c0_8, %c0_9] : memref<1x128xf32, #tpu.memory_space<vmem>>, vector<1x128xf32>
    %cst_10 = arith.constant dense<0.000000e+00> : vector<8x128xf32>
    %12 = tpu.matmul %9, %10, %cst_10 {dimension_numbers = #tpu.dot_dimension_numbers<[1], [0], [0], [1], [0, 0, 1, 1], [], []>} : vector<8x128xbf16>, vector<128x128xbf16>, vector<8x128xf32> -> vector<8x128xf32>
    %13 = vector.broadcast %11 : vector<1x128xf32> to vector<8x128xf32>
    %14 = arith.addf %12, %13 : vector<8x128xf32>
    %cst_11 = arith.constant 0.000000e+00 : f32
    %15 = vector.broadcast %cst_11 : f32 to vector<8x128xf32>
    %16 = arith.maximumf %14, %15 : vector<8x128xf32>
    %17 = arith.truncf %16 : vector<8x128xf32> to vector<8x128xbf16>
    %c0_12 = arith.constant 0 : index
    %c0_13 = arith.constant 0 : index
    %18 = vector.load %arg6[%c0_12, %c0_13] : memref<128x10xbf16, #tpu.memory_space<vmem>>, vector<128x10xbf16>
    %c0_14 = arith.constant 0 : index
    %c0_15 = arith.constant 0 : index
    %19 = vector.load %arg7[%c0_14, %c0_15] : memref<1x10xf32, #tpu.memory_space<vmem>>, vector<1x10xf32>
    %cst_16 = arith.constant dense<0.000000e+00> : vector<8x10xf32>
    %20 = tpu.matmul %17, %18, %cst_16 {dimension_numbers = #tpu.dot_dimension_numbers<[1], [0], [0], [1], [0, 0, 1, 1], [], []>} : vector<8x128xbf16>, vector<128x10xbf16>, vector<8x10xf32> -> vector<8x10xf32>
    %21 = vector.broadcast %19 : vector<1x10xf32> to vector<8x10xf32>
    %22 = arith.addf %20, %21 : vector<8x10xf32>
    %c0_17 = arith.constant 0 : index
    %c0_18 = arith.constant 0 : index
    %23 = vector.load %arg8[%c0_17, %c0_18] : memref<8x10xf32, #tpu.memory_space<vmem>>, vector<8x10xf32>
    tpu.vector_store %arg8[%c0_17, %c0_18], %22 {strides = array<i32>} : memref<8x10xf32, #tpu.memory_space<vmem>>, vector<8x10xf32>,
    return
  }
  func.func @transform_0(%arg0: i32) -> (i32, i32) {
    %c0_i32 = arith.constant 0 : i32
    %c0_i32_0 = arith.constant 0 : i32
    return %arg0, %c0_i32 : i32, i32
  }
  func.func @transform_1(%arg0: i32) -> (i32, i32) {
    %c0_i32 = arith.constant 0 : i32
    %c0_i32_0 = arith.constant 0 : i32
    %c0_i32_1 = arith.constant 0 : i32
    return %c0_i32, %c0_i32_0 : i32, i32
  }
  func.func @transform_2(%arg0: i32) -> (i32, i32) {
    %c0_i32 = arith.constant 0 : i32
    %c0_i32_0 = arith.constant 0 : i32
    %c0_i32_1 = arith.constant 0 : i32
    return %c0_i32, %c0_i32_0 : i32, i32
  }
  func.func @transform_3(%arg0: i32) -> (i32, i32) {
    %c0_i32 = arith.constant 0 : i32
    %c0_i32_0 = arith.constant 0 : i32
    %c0_i32_1 = arith.constant 0 : i32
    return %c0_i32, %c0_i32_0 : i32, i32
  }
  func.func @transform_4(%arg0: i32) -> (i32, i32) {
    %c0_i32 = arith.constant 0 : i32
    %c0_i32_0 = arith.constant 0 : i32
    %c0_i32_1 = arith.constant 0 : i32
    return %c0_i32, %c0_i32_0 : i32, i32
  }
  func.func @transform_5(%arg0: i32) -> (i32, i32) {
    %c0_i32 = arith.constant 0 : i32
    %c0_i32_0 = arith.constant 0 : i32
    %c0_i32_1 = arith.constant 0 : i32
    return %c0_i32, %c0_i32_0 : i32, i32
  }
  func.func @transform_6(%arg0: i32) -> (i32, i32) {
    %c0_i32 = arith.constant 0 : i32
    %c0_i32_0 = arith.constant 0 : i32
    %c0_i32_1 = arith.constant 0 : i32
    return %c0_i32, %c0_i32_0 : i32, i32
  }
  func.func @transform_7(%arg0: i32) -> (i32, i32) {
    %c0_i32 = arith.constant 0 : i32
    %c0_i32_0 = arith.constant 0 : i32
    return %arg0, %c0_i32 : i32, i32
  }
}

module attributes {stable_mosaic.version = 11 : i64} {
  func.func @_fused_mlp_kernel(%arg0: i32, %arg1: memref<8x64xf32, #tpu.memory_space<vmem>>, %arg2: memref<64x128xbf16, #tpu.memory_space<vmem>>, %arg3: memref<1x128xf32, #tpu.memory_space<vmem>>, %arg4: memref<128x128xbf16, #tpu.memory_space<vmem>>, %arg5: memref<1x128xf32, #tpu.memory_space<vmem>>, %arg6: memref<128x10xbf16, #tpu.memory_space<vmem>>, %arg7: memref<1x10xf32, #tpu.memory_space<vmem>>, %arg8: memref<8x10xf32, #tpu.memory_space<vmem>>) attributes {dimension_semantics = [#tpu.dimension_semantics<parallel>], iteration_bounds = array<i64: 1>, scalar_prefetch = 0 : i64, scratch_operands = 0 : i64, tpu.core_type = #tpu.core_type<tc>, window_params = [{transform_indices = @transform_0, window_bounds = array<i64: 8, 64>}, {pipeline_mode = #tpu.pipeline_mode<synchronous>, transform_indices = @transform_1, window_bounds = array<i64: 64, 128>}, {pipeline_mode = #tpu.pipeline_mode<synchronous>, transform_indices = @transform_2, window_bounds = array<i64: 1, 128>}, {pipeline_mode = #tpu.pipeline_mode<synchronous>, transform_indices = @transform_3, window_bounds = array<i64: 128, 128>}, {pipeline_mode = #tpu.pipeline_mode<synchronous>, transform_indices = @transform_4, window_bounds = array<i64: 1, 128>}, {pipeline_mode = #tpu.pipeline_mode<synchronous>, transform_indices = @transform_5, window_bounds = array<i64: 128, 10>}, {pipeline_mode = #tpu.pipeline_mode<synchronous>, transform_indices = @transform_6, window_bounds = array<i64: 1, 10>}, {transform_indices = @transform_7, window_bounds = array<i64: 8, 10>}]} {
    %c0 = arith.constant 0 : index
    %c0_0 = arith.constant 0 : index
    %0 = vector.load %arg1[%c0, %c0_0] : memref<8x64xf32, #tpu.memory_space<vmem>>, vector<8x64xf32>
    %1 = arith.truncf %0 : vector<8x64xf32> to vector<8x64xbf16>
    %c0_1 = arith.constant 0 : index
    %c0_2 = arith.constant 0 : index
    %2 = vector.load %arg2[%c0_1, %c0_2] : memref<64x128xbf16, #tpu.memory_space<vmem>>, vector<64x128xbf16>
    %c0_3 = arith.constant 0 : index
    %c0_4 = arith.constant 0 : index
    %3 = vector.load %arg3[%c0_3, %c0_4] : memref<1x128xf32, #tpu.memory_space<vmem>>, vector<1x128xf32>
    %cst = arith.constant dense<0.000000e+00> : vector<8x128xf32>
    %4 = tpu.matmul %1, %2, %cst {dimension_numbers = #tpu.dot_dimension_numbers<[1], [0], [0], [1], [0, 0, 1, 1], [], []>} : vector<8x64xbf16>, vector<64x128xbf16>, vector<8x128xf32> -> vector<8x128xf32>
    %5 = vector.broadcast %3 : vector<1x128xf32> to vector<8x128xf32>
    %6 = arith.addf %4, %5 : vector<8x128xf32>
    %cst_5 = arith.constant 0.000000e+00 : f32
    %7 = vector.broadcast %cst_5 : f32 to vector<8x128xf32>
    %8 = arith.maximumf %6, %7 : vector<8x128xf32>
    %9 = arith.truncf %8 : vector<8x128xf32> to vector<8x128xbf16>
    %c0_6 = arith.constant 0 : index
    %c0_7 = arith.constant 0 : index
    %10 = vector.load %arg4[%c0_6, %c0_7] : memref<128x128xbf16, #tpu.memory_space<vmem>>, vector<128x128xbf16>
    %c0_8 = arith.constant 0 : index
    %c0_9 = arith.constant 0 : index
    %11 = vector.load %arg5[%c0_8, %c0_9] : memref<1x128xf32, #tpu.memory_space<vmem>>, vector<1x128xf32>
    %cst_10 = arith.constant dense<0.000000e+00> : vector<8x128xf32>
    %12 = tpu.matmul %9, %10, %cst_10 {dimension_numbers = #tpu.dot_dimension_numbers<[1], [0], [0], [1], [0, 0, 1, 1], [], []>} : vector<8x128xbf16>, vector<128x128xbf16>, vector<8x128xf32> -> vector<8x128xf32>
    %13 = vector.broadcast %11 : vector<1x128xf32> to vector<8x128xf32>
    %14 = arith.addf %12, %13 : vector<8x128xf32>
    %cst_11 = arith.constant 0.000000e+00 : f32
    %15 = vector.broadcast %cst_11 : f32 to vector<8x128xf32>
    %16 = arith.maximumf %14, %15 : vector<8x128xf32>
    %17 = arith.truncf %16 : vector<8x128xf32> to vector<8x128xbf16>
    %c0_12 = arith.constant 0 : index
    %c0_13 = arith.constant 0 : index
    %18 = vector.load %arg6[%c0_12, %c0_13] : memref<128x10xbf16, #tpu.memory_space<vmem>>, vector<128x10xbf16>
    %c0_14 = arith.constant 0 : index
    %c0_15 = arith.constant 0 : index
    %19 = vector.load %arg7[%c0_14, %c0_15] : memref<1x10xf32, #tpu.memory_space<vmem>>, vector<1x10xf32>
    %cst_16 = arith.constant dense<0.000000e+00> : vector<8x10xf32>
    %20 = tpu.matmul %17, %18, %cst_16 {dimension_numbers = #tpu.dot_dimension_numbers<[1], [0], [0], [1], [0, 0, 1, 1], [], []>} : vector<8x128xbf16>, vector<128x10xbf16>, vector<8x10xf32> -> vector<8x10xf32>
    %21 = vector.broadcast %19 : vector<1x10xf32> to vector<8x10xf32>
    %22 = arith.addf %20, %21 : vector<8x10xf32>
    %c0_17 = arith.constant 0 : index
    %c0_18 = arith.constant 0 : index
    %23 = vector.load %arg8[%c0_17, %c0_18] : memref<8x10xf32, #tpu.memory_space<vmem>>, vector<8x10xf32>
    tpu.vector_store %arg8[%c0_17, %c0_18], %22 {strides = array<i32>} : memref<8x10xf32, #tpu.memory_space<vmem>>, vector<8x10xf32>,
    return
  }
  func.func @transform_0(%arg0: i32) -> (i32, i32) {
    %c0_i32 = arith.constant 0 : i32
    %c0_i32_0 = arith.constant 0 : i32
    return %arg0, %c0_i32 : i32, i32
  }
  func.func @transform_1(%arg0: i32) -> (i32, i32) {
    %c0_i32 = arith.constant 0 : i32
    %c0_i32_0 = arith.constant 0 : i32
    %c0_i32_1 = arith.constant 0 : i32
    return %c0_i32, %c0_i32_0 : i32, i32
  }
  func.func @transform_2(%arg0: i32) -> (i32, i32) {
    %c0_i32 = arith.constant 0 : i32
    %c0_i32_0 = arith.constant 0 : i32
    %c0_i32_1 = arith.constant 0 : i32
    return %c0_i32, %c0_i32_0 : i32, i32
  }
  func.func @transform_3(%arg0: i32) -> (i32, i32) {
    %c0_i32 = arith.constant 0 : i32
    %c0_i32_0 = arith.constant 0 : i32
    %c0_i32_1 = arith.constant 0 : i32
    return %c0_i32, %c0_i32_0 : i32, i32
  }
  func.func @transform_4(%arg0: i32) -> (i32, i32) {
    %c0_i32 = arith.constant 0 : i32
    %c0_i32_0 = arith.constant 0 : i32
    %c0_i32_1 = arith.constant 0 : i32
    return %c0_i32, %c0_i32_0 : i32, i32
  }
  func.func @transform_5(%arg0: i32) -> (i32, i32) {
    %c0_i32 = arith.constant 0 : i32
    %c0_i32_0 = arith.constant 0 : i32
    %c0_i32_1 = arith.constant 0 : i32
    return %c0_i32, %c0_i32_0 : i32, i32
  }
  func.func @transform_6(%arg0: i32) -> (i32, i32) {
    %c0_i32 = arith.constant 0 : i32
    %c0_i32_0 = arith.constant 0 : i32
    %c0_i32_1 = arith.constant 0 : i32
    return %c0_i32, %c0_i32_0 : i32, i32
  }
  func.func @transform_7(%arg0: i32) -> (i32, i32) {
    %c0_i32 = arith.constant 0 : i32
    %c0_i32_0 = arith.constant 0 : i32
    return %arg0, %c0_i32 : i32, i32
  }
}

</mosaic_0001>

<llo_original>
// kernel: tpu_custom_call.1
$region0: #{tpu_custom_call.1}
  #allocation0 [shape = 'u32[]', space=smem, size = 0x4, offset = 0x4, fixed_abs, tag = 'smem constant byte address 0x4 - core index']
  #allocation1 [shape = 'u32[72,128]{1,0:T(1,128)}', space=vmem, size = 0x9000, scoped, tag = 'internal scratch']
  %s0 = inlined_call_operand.vmem [shape: f32[8,64], index: 0, kind: input, shape index: {}]
  %s1 = inlined_call_operand.hbm [shape: bf16[64,128], index: 1, kind: input, shape index: {}]
  %s2 = inlined_call_operand.vmem [shape: f32[1,128], index: 2, kind: input, shape index: {}]
  %s3 = inlined_call_operand.vmem [shape: bf16[128,128], index: 3, kind: input, shape index: {}]
  %s4 = inlined_call_operand.vmem [shape: f32[1,128], index: 4, kind: input, shape index: {}]
  %s5 = inlined_call_operand.vmem [shape: bf16[128,10], index: 5, kind: input, shape index: {}]
  %s6 = inlined_call_operand.vmem [shape: f32[1,10], index: 6, kind: input, shape index: {}]
  %s7 = inlined_call_operand.hbm [shape: f32[8,10], index: 7, kind: output, shape index: {}]
  %s8 = sld [smem:[#allocation0]]
  $region42: #{tpu_custom_call.1} parent=0
    _
  %s10 = ssub.s32 1, %s8
  %s11 = scalar_select 0, %s10, %s8
  $region1: #{tpu_custom_call.1} parent=0
    #allocation2 [shape = 'u8[16384]{0}', space=vmem, size = 0x4000, scoped, tag = 'input window, operand 1, single buffered']
    #allocation3 [shape = 's32[1]{0}', space=sflag, size = 0x4, scoped, tag = 'scoped memory for tpu_custom_call.1']
    #allocation4 [shape = 's32[1]{0}', space=sflag, size = 0x4, scoped, tag = 'scoped memory for tpu_custom_call.1']
    #allocation5 [shape = 'u8[4096]{0}', space=vmem, size = 0x1000, scoped, tag = 'output window, operand 0, single buffered']
    %12 = vsyncpa [#allocation3], 0
    %13 = vsyncpa [#allocation4], 0
    // Predicated region
    $region2: #{tpu_custom_call.1} parent=1 // pred_check
      _
    $region3: #{tpu_custom_call.1} parent=1 // pred_check_branch
      %15 = sbr.rel (0) target = $region5
    $region4: #{tpu_custom_call.1} parent=1 // pred_region
      _
    $region5: #{tpu_custom_call.1} parent=1 // pred_fallthru
      _
    // Predicated region
    $region6: #{tpu_custom_call.1} parent=1 // pred_check
      _
    $region7: #{tpu_custom_call.1} parent=1 // pred_check_branch
      %17 = sbr.rel (0) target = $region9
    $region8: #{tpu_custom_call.1} parent=1 // pred_region
      %19 = vsyncadd [#allocation3], 0
      %s20 = sshll.u32 %s1, 4
      %s21 = int_to_ptr.hbm [resolvable:$true] %s20
      %s22 = sshll.u32 [#allocation2], 4
      %s23 = int_to_ptr.vmem [resolvable:$true] %s22
      %28 = dma.hbm_to_vmem [thread:$0]  %s21, 512, %s23, [#allocation3], 64, 64, 4
    $region9: #{tpu_custom_call.1} parent=1 // pred_fallthru
      _
    // Predicated region
    $region10: #{tpu_custom_call.1} parent=1 // pred_check
      _
    $region11: #{tpu_custom_call.1} parent=1 // pred_check_branch
      %30 = sbr.rel (0) target = $region13
    $region12: #{tpu_custom_call.1} parent=1 // pred_region
      _
    $region13: #{tpu_custom_call.1} parent=1 // pred_fallthru
      _
    // Predicated region
    $region14: #{tpu_custom_call.1} parent=1 // pred_check
      _
    $region15: #{tpu_custom_call.1} parent=1 // pred_check_branch
      %32 = sbr.rel (0) target = $region17
    $region16: #{tpu_custom_call.1} parent=1 // pred_region
      _
    $region17: #{tpu_custom_call.1} parent=1 // pred_fallthru
      _
    // Predicated region
    $region18: #{tpu_custom_call.1} parent=1 // pred_check
      _
    $region19: #{tpu_custom_call.1} parent=1 // pred_check_branch
      %34 = sbr.rel (0) target = $region21
    $region20: #{tpu_custom_call.1} parent=1 // pred_region
      _
    $region21: #{tpu_custom_call.1} parent=1 // pred_fallthru
      _
    // Predicated region
    $region22: #{tpu_custom_call.1} parent=1 // pred_check
      _
    $region23: #{tpu_custom_call.1} parent=1 // pred_check_branch
      %36 = sbr.rel (0) target = $region25
    $region24: #{tpu_custom_call.1} parent=1 // pred_region
      _
    $region25: #{tpu_custom_call.1} parent=1 // pred_fallthru
      _
    // Predicated region
    $region26: #{tpu_custom_call.1} parent=1 // pred_check
      _
    $region27: #{tpu_custom_call.1} parent=1 // pred_check_branch
      %38 = sbr.rel (0) target = $region29
    $region28: #{tpu_custom_call.1} parent=1 // pred_region
      _
    $region29: #{tpu_custom_call.1} parent=1 // pred_fallthru
      _
    // Predicated region
    $region30: #{tpu_custom_call.1} parent=1 // pred_check
      _
    $region31: #{tpu_custom_call.1} parent=1 // pred_check_branch
      %40 = sbr.rel (0) target = $region33
    $region32: #{tpu_custom_call.1} parent=1 // pred_region
      %42 = dma.done [#allocation3], 512
    $region33: #{tpu_custom_call.1} parent=1 // pred_fallthru
      _
    %v44 = vld [vmem:[%s0] sm:$0xff]
    %v45 = vpack.c.bf16 %v44, %v44
    %v46 = vld [vmem:[#allocation2] sm:$0xf]
    %v47 = vld [vmem:[#allocation2 + $0x4] sm:$0xf]
    %v48 = vld [vmem:[#allocation2 + $0x8] sm:$0xf]
    %v49 = vld [vmem:[#allocation2 + $0xc] sm:$0xf]
    %v50 = vld [vmem:[#allocation2 + $0x10] sm:$0xf]
    %v51 = vld [vmem:[#allocation2 + $0x14] sm:$0xf]
    %v52 = vld [vmem:[#allocation2 + $0x18] sm:$0xf]
    %v53 = vld [vmem:[#allocation2 + $0x1c] sm:$0xf]
    %v54 = vld [vmem:[%s2] sm:$0x1]
    %v56 = vperm.slane %v54, 0
    %v66 = vunpack.c.l.b16 %v46
    %v67 = vunpack.c.l.b16 %v47
    %v68 = vunpack.c.l.b16 %v48
    %v69 = vunpack.c.l.b16 %v49
    %v70 = vunpack.c.l.b16 %v50
    %v71 = vunpack.c.l.b16 %v51
    %v72 = vunpack.c.l.b16 %v52
    %v73 = vunpack.c.l.b16 %v53
    %v74 = vpack.c.b16 %v67, %v66
    %v75 = vpack.c.b16 %v69, %v68
    %v76 = vpack.c.b16 %v71, %v70
    %v77 = vpack.c.b16 %v73, %v72
    %vm82 = vcmask 523264
    %v84 = vsel %vm82, %v45, 0
    %86 = vmatpush.bf16.msra.mxu0 0
    %87 = vmatpush.bf16.msra.mxu0 0
    %88 = vmatpush.bf16.msra.mxu0 0
    %89 = vmatpush.bf16.msra.mxu0 0
    %90 = vmatpush.bf16.msra.mxu0 %v77
    %91 = vmatpush.bf16.msra.mxu0 %v76
    %92 = vmatpush.bf16.msra.mxu0 %v75
    %93 = vmatpush.bf16.msra.mxu0 %v74
    %94 = vmatmul.bf16.gmra.mxu0 %v84
    %v95 = vpop.f32.mrf.mxu0
    %v96 = vadd.f32 %v56, %v95
    %v97 = vpop.f32.mrf.mxu0
    %98 = vdwg.mxu0
    %v99 = vmax.f32 %v96, 0.0
    %v100 = vpack.c.bf16 %v99, %v99
    %v101 = vld [vmem:[%s3] sm:$0xf]
    %v102 = vld [vmem:[%s3 + $0x4] sm:$0xf]
    %v103 = vld [vmem:[%s3 + $0x8] sm:$0xf]
    %v104 = vld [vmem:[%s3 + $0xc] sm:$0xf]
    %v105 = vld [vmem:[%s3 + $0x10] sm:$0xf]
    %v106 = vld [vmem:[%s3 + $0x14] sm:$0xf]
    %v107 = vld [vmem:[%s3 + $0x18] sm:$0xf]
    %v108 = vld [vmem:[%s3 + $0x1c] sm:$0xf]
    %v109 = vld [vmem:[%s3 + $0x20] sm:$0xf]
    %v110 = vld [vmem:[%s3 + $0x24] sm:$0xf]
    %v111 = vld [vmem:[%s3 + $0x28] sm:$0xf]
    %v112 = vld [vmem:[%s3 + $0x2c] sm:$0xf]
    %v113 = vld [vmem:[%s3 + $0x30] sm:$0xf]
    %v114 = vld [vmem:[%s3 + $0x34] sm:$0xf]
    %v115 = vld [vmem:[%s3 + $0x38] sm:$0xf]
    %v116 = vld [vmem:[%s3 + $0x3c] sm:$0xf]
    %v117 = vld [vmem:[%s4] sm:$0x1]
    %v119 = vperm.slane %v117, 0
    %v137 = vunpack.c.l.b16 %v101
    %v138 = vunpack.c.l.b16 %v102
    %v139 = vunpack.c.l.b16 %v103
    %v140 = vunpack.c.l.b16 %v104
    %v141 = vunpack.c.l.b16 %v105
    %v142 = vunpack.c.l.b16 %v106
    %v143 = vunpack.c.l.b16 %v107
    %v144 = vunpack.c.l.b16 %v108
    %v145 = vunpack.c.l.b16 %v109
    %v146 = vunpack.c.l.b16 %v110
    %v147 = vunpack.c.l.b16 %v111
    %v148 = vunpack.c.l.b16 %v112
    %v149 = vunpack.c.l.b16 %v113
    %v150 = vunpack.c.l.b16 %v114
    %v151 = vunpack.c.l.b16 %v115
    %v152 = vunpack.c.l.b16 %v116
    %v153 = vpack.c.b16 %v138, %v137
    %v154 = vpack.c.b16 %v140, %v139
    %v155 = vpack.c.b16 %v142, %v141
    %v156 = vpack.c.b16 %v144, %v143
    %v157 = vpack.c.b16 %v146, %v145
    %v158 = vpack.c.b16 %v148, %v147
    %v159 = vpack.c.b16 %v150, %v149
    %v160 = vpack.c.b16 %v152, %v151
    %169 = vmatpush.bf16.msra.mxu0 %v160
    %170 = vmatpush.bf16.msra.mxu0 %v159
    %171 = vmatpush.bf16.msra.mxu0 %v158
    %172 = vmatpush.bf16.msra.mxu0 %v157
    %173 = vmatpush.bf16.msra.mxu0 %v156
    %174 = vmatpush.bf16.msra.mxu0 %v155
    %175 = vmatpush.bf16.msra.mxu0 %v154
    %176 = vmatpush.bf16.msra.mxu0 %v153
    %177 = vmatmul.bf16.gmra.mxu0 %v100
    %v178 = vpop.f32.mrf.mxu0
    %v179 = vadd.f32 %v119, %v178
    %v180 = vpop.f32.mrf.mxu0
    %181 = vdwg.mxu0
    %v182 = vmax.f32 %v179, 0.0
    %v183 = vpack.c.bf16 %v182, %v182
    %v184 = vld [vmem:[%s5] sm:$0xf]
    %v185 = vld [vmem:[%s5 + $0x4] sm:$0xf]
    %v186 = vld [vmem:[%s5 + $0x8] sm:$0xf]
    %v187 = vld [vmem:[%s5 + $0xc] sm:$0xf]
    %v188 = vld [vmem:[%s5 + $0x10] sm:$0xf]
    %v189 = vld [vmem:[%s5 + $0x14] sm:$0xf]
    %v190 = vld [vmem:[%s5 + $0x18] sm:$0xf]
    %v191 = vld [vmem:[%s5 + $0x1c] sm:$0xf]
    %v192 = vld [vmem:[%s5 + $0x20] sm:$0xf]
    %v193 = vld [vmem:[%s5 + $0x24] sm:$0xf]
    %v194 = vld [vmem:[%s5 + $0x28] sm:$0xf]
    %v195 = vld [vmem:[%s5 + $0x2c] sm:$0xf]
    %v196 = vld [vmem:[%s5 + $0x30] sm:$0xf]
    %v197 = vld [vmem:[%s5 + $0x34] sm:$0xf]
    %v198 = vld [vmem:[%s5 + $0x38] sm:$0xf]
    %v199 = vld [vmem:[%s5 + $0x3c] sm:$0xf]
    %v200 = vld [vmem:[%s6] sm:$0x1]
    %v202 = vperm.slane %v200, 0
    %v220 = vunpack.c.l.b16 %v184
    %v221 = vunpack.c.l.b16 %v185
    %v222 = vunpack.c.l.b16 %v186
    %v223 = vunpack.c.l.b16 %v187
    %v224 = vunpack.c.l.b16 %v188
    %v225 = vunpack.c.l.b16 %v189
    %v226 = vunpack.c.l.b16 %v190
    %v227 = vunpack.c.l.b16 %v191
    %v228 = vunpack.c.l.b16 %v192
    %v229 = vunpack.c.l.b16 %v193
    %v230 = vunpack.c.l.b16 %v194
    %v231 = vunpack.c.l.b16 %v195
    %v232 = vunpack.c.l.b16 %v196
    %v233 = vunpack.c.l.b16 %v197
    %v234 = vunpack.c.l.b16 %v198
    %v235 = vunpack.c.l.b16 %v199
    %v236 = vpack.c.b16 %v221, %v220
    %v237 = vpack.c.b16 %v223, %v222
    %v238 = vpack.c.b16 %v225, %v224
    %v239 = vpack.c.b16 %v227, %v226
    %v240 = vpack.c.b16 %v229, %v228
    %v241 = vpack.c.b16 %v231, %v230
    %v242 = vpack.c.b16 %v233, %v232
    %v243 = vpack.c.b16 %v235, %v234
    %252 = vmatpush.bf16.msra.mxu0 %v243
    %253 = vmatpush.bf16.msra.mxu0 %v242
    %254 = vmatpush.bf16.msra.mxu0 %v241
    %255 = vmatpush.bf16.msra.mxu0 %v240
    %256 = vmatpush.bf16.msra.mxu0 %v239
    %257 = vmatpush.bf16.msra.mxu0 %v238
    %258 = vmatpush.bf16.msra.mxu0 %v237
    %259 = vmatpush.bf16.msra.mxu0 %v236
    %260 = vmatmul.bf16.gmra.mxu0 %v183
    %v261 = vpop.f32.mrf.mxu0
    %v262 = vadd.f32 %v202, %v261
    %v263 = vpop.f32.mrf.mxu0
    %264 = vdwg.mxu0
    %vm265 = vcmask 80896
    %266 = vst.msk [vmem:[#allocation5] sm:$0xff] %vm265, %v262
    // Predicated region
    $region34: #{tpu_custom_call.1} parent=1 // pred_check
      _
    $region35: #{tpu_custom_call.1} parent=1 // pred_check_branch
      %268 = sbr.rel (0) target = $region37
    $region36: #{tpu_custom_call.1} parent=1 // pred_region
      %270 = vsyncadd [#allocation4], 0
      %s272 = sshll.u32 [#allocation5], 4
      %s273 = int_to_ptr.vmem [resolvable:$true] %s272
      %s274 = sshll.u32 %s7, 4
      %s275 = int_to_ptr.hbm [resolvable:$true] %s274
      %277 = dma.vmem_to_hbm [thread:$0]  %s273, 128, %s275, [#allocation4]
    $region37: #{tpu_custom_call.1} parent=1 // pred_fallthru
      _
    // Predicated region
    $region38: #{tpu_custom_call.1} parent=1 // pred_check
      _
    $region39: #{tpu_custom_call.1} parent=1 // pred_check_branch
      %279 = sbr.rel (0) target = $region41
    $region40: #{tpu_custom_call.1} parent=1 // pred_region
      %281 = dma.done [#allocation4], 128
    $region41: #{tpu_custom_call.1} parent=1 // pred_fallthru
      _
    %282 = vsyncpa [#allocation3], 1
    %283 = vsyncpa [#allocation4], 1

// kernel: tpu_custom_call.1
$region0: #{tpu_custom_call.1}
  #allocation0 [shape = 'u32[]', space=smem, size = 0x4, offset = 0x4, fixed_abs, tag = 'smem constant byte address 0x4 - core index']
  #allocation1 [shape = 'u32[72,128]{1,0:T(1,128)}', space=vmem, size = 0x9000, scoped, tag = 'internal scratch']
  %s0 = inlined_call_operand.vmem [shape: f32[8,64], index: 0, kind: input, shape index: {}]
  %s1 = inlined_call_operand.hbm [shape: bf16[64,128], index: 1, kind: input, shape index: {}]
  %s2 = inlined_call_operand.vmem [shape: f32[1,128], index: 2, kind: input, shape index: {}]
  %s3 = inlined_call_operand.vmem [shape: bf16[128,128], index: 3, kind: input, shape index: {}]
  %s4 = inlined_call_operand.vmem [shape: f32[1,128], index: 4, kind: input, shape index: {}]
  %s5 = inlined_call_operand.vmem [shape: bf16[128,10], index: 5, kind: input, shape index: {}]
  %s6 = inlined_call_operand.vmem [shape: f32[1,10], index: 6, kind: input, shape index: {}]
  %s7 = inlined_call_operand.hbm [shape: f32[8,10], index: 7, kind: output, shape index: {}]
  %s8 = sld [smem:[#allocation0]]
  $region42: #{tpu_custom_call.1} parent=0
    _
  %s10 = ssub.s32 1, %s8
  %s11 = scalar_select 0, %s10, %s8
  $region1: #{tpu_custom_call.1} parent=0
    #allocation2 [shape = 'u8[16384]{0}', space=vmem, size = 0x4000, scoped, tag = 'input window, operand 1, single buffered']
    #allocation3 [shape = 's32[1]{0}', space=sflag, size = 0x4, scoped, tag = 'scoped memory for tpu_custom_call.1']
    #allocation4 [shape = 's32[1]{0}', space=sflag, size = 0x4, scoped, tag = 'scoped memory for tpu_custom_call.1']
    #allocation5 [shape = 'u8[4096]{0}', space=vmem, size = 0x1000, scoped, tag = 'output window, operand 0, single buffered']
    %12 = vsyncpa [#allocation3], 0
    %13 = vsyncpa [#allocation4], 0
    // Predicated region
    $region2: #{tpu_custom_call.1} parent=1 // pred_check
      _
    $region3: #{tpu_custom_call.1} parent=1 // pred_check_branch
      %15 = sbr.rel (0) target = $region5
    $region4: #{tpu_custom_call.1} parent=1 // pred_region
      _
    $region5: #{tpu_custom_call.1} parent=1 // pred_fallthru
      _
    // Predicated region
    $region6: #{tpu_custom_call.1} parent=1 // pred_check
      _
    $region7: #{tpu_custom_call.1} parent=1 // pred_check_branch
      %17 = sbr.rel (0) target = $region9
    $region8: #{tpu_custom_call.1} parent=1 // pred_region
      %19 = vsyncadd [#allocation3], 0
      %s20 = sshll.u32 %s1, 4
      %s21 = int_to_ptr.hbm [resolvable:$true] %s20
      %s22 = sshll.u32 [#allocation2], 4
      %s23 = int_to_ptr.vmem [resolvable:$true] %s22
      %28 = dma.hbm_to_vmem [thread:$0]  %s21, 512, %s23, [#allocation3], 64, 64, 4
    $region9: #{tpu_custom_call.1} parent=1 // pred_fallthru
      _
    // Predicated region
    $region10: #{tpu_custom_call.1} parent=1 // pred_check
      _
    $region11: #{tpu_custom_call.1} parent=1 // pred_check_branch
      %30 = sbr.rel (0) target = $region13
    $region12: #{tpu_custom_call.1} parent=1 // pred_region
      _
    $region13: #{tpu_custom_call.1} parent=1 // pred_fallthru
      _
    // Predicated region
    $region14: #{tpu_custom_call.1} parent=1 // pred_check
      _
    $region15: #{tpu_custom_call.1} parent=1 // pred_check_branch
      %32 = sbr.rel (0) target = $region17
    $region16: #{tpu_custom_call.1} parent=1 // pred_region
      _
    $region17: #{tpu_custom_call.1} parent=1 // pred_fallthru
      _
    // Predicated region
    $region18: #{tpu_custom_call.1} parent=1 // pred_check
      _
    $region19: #{tpu_custom_call.1} parent=1 // pred_check_branch
      %34 = sbr.rel (0) target = $region21
    $region20: #{tpu_custom_call.1} parent=1 // pred_region
      _
    $region21: #{tpu_custom_call.1} parent=1 // pred_fallthru
      _
    // Predicated region
    $region22: #{tpu_custom_call.1} parent=1 // pred_check
      _
    $region23: #{tpu_custom_call.1} parent=1 // pred_check_branch
      %36 = sbr.rel (0) target = $region25
    $region24: #{tpu_custom_call.1} parent=1 // pred_region
      _
    $region25: #{tpu_custom_call.1} parent=1 // pred_fallthru
      _
    // Predicated region
    $region26: #{tpu_custom_call.1} parent=1 // pred_check
      _
    $region27: #{tpu_custom_call.1} parent=1 // pred_check_branch
      %38 = sbr.rel (0) target = $region29
    $region28: #{tpu_custom_call.1} parent=1 // pred_region
      _
    $region29: #{tpu_custom_call.1} parent=1 // pred_fallthru
      _
    // Predicated region
    $region30: #{tpu_custom_call.1} parent=1 // pred_check
      _
    $region31: #{tpu_custom_call.1} parent=1 // pred_check_branch
      %40 = sbr.rel (0) target = $region33
    $region32: #{tpu_custom_call.1} parent=1 // pred_region
      %42 = dma.done [#allocation3], 512
    $region33: #{tpu_custom_call.1} parent=1 // pred_fallthru
      _
    %v44 = vld [vmem:[%s0] sm:$0xff]
    %v45 = vpack.c.bf16 %v44, %v44
    %v46 = vld [vmem:[#allocation2] sm:$0xf]
    %v47 = vld [vmem:[#allocation2 + $0x4] sm:$0xf]
    %v48 = vld [vmem:[#allocation2 + $0x8] sm:$0xf]
    %v49 = vld [vmem:[#allocation2 + $0xc] sm:$0xf]
    %v50 = vld [vmem:[#allocation2 + $0x10] sm:$0xf]
    %v51 = vld [vmem:[#allocation2 + $0x14] sm:$0xf]
    %v52 = vld [vmem:[#allocation2 + $0x18] sm:$0xf]
    %v53 = vld [vmem:[#allocation2 + $0x1c] sm:$0xf]
    %v54 = vld [vmem:[%s2] sm:$0x1]
    %v56 = vperm.slane %v54, 0
    %v66 = vunpack.c.l.b16 %v46
    %v67 = vunpack.c.l.b16 %v47
    %v68 = vunpack.c.l.b16 %v48
    %v69 = vunpack.c.l.b16 %v49
    %v70 = vunpack.c.l.b16 %v50
    %v71 = vunpack.c.l.b16 %v51
    %v72 = vunpack.c.l.b16 %v52
    %v73 = vunpack.c.l.b16 %v53
    %v74 = vpack.c.b16 %v67, %v66
    %v75 = vpack.c.b16 %v69, %v68
    %v76 = vpack.c.b16 %v71, %v70
    %v77 = vpack.c.b16 %v73, %v72
    %vm82 = vcmask 523264
    %v84 = vsel %vm82, %v45, 0
    %86 = vmatpush.bf16.msra.mxu0 0
    %87 = vmatpush.bf16.msra.mxu0 0
    %88 = vmatpush.bf16.msra.mxu0 0
    %89 = vmatpush.bf16.msra.mxu0 0
    %90 = vmatpush.bf16.msra.mxu0 %v77
    %91 = vmatpush.bf16.msra.mxu0 %v76
    %92 = vmatpush.bf16.msra.mxu0 %v75
    %93 = vmatpush.bf16.msra.mxu0 %v74
    %94 = vmatmul.bf16.gmra.mxu0 %v84
    %v95 = vpop.f32.mrf.mxu0
    %v96 = vadd.f32 %v56, %v95
    %v97 = vpop.f32.mrf.mxu0
    %98 = vdwg.mxu0
    %v99 = vmax.f32 %v96, 0.0
    %v100 = vpack.c.bf16 %v99, %v99
    %v101 = vld [vmem:[%s3] sm:$0xf]
    %v102 = vld [vmem:[%s3 + $0x4] sm:$0xf]
    %v103 = vld [vmem:[%s3 + $0x8] sm:$0xf]
    %v104 = vld [vmem:[%s3 + $0xc] sm:$0xf]
    %v105 = vld [vmem:[%s3 + $0x10] sm:$0xf]
    %v106 = vld [vmem:[%s3 + $0x14] sm:$0xf]
    %v107 = vld [vmem:[%s3 + $0x18] sm:$0xf]
    %v108 = vld [vmem:[%s3 + $0x1c] sm:$0xf]
    %v109 = vld [vmem:[%s3 + $0x20] sm:$0xf]
    %v110 = vld [vmem:[%s3 + $0x24] sm:$0xf]
    %v111 = vld [vmem:[%s3 + $0x28] sm:$0xf]
    %v112 = vld [vmem:[%s3 + $0x2c] sm:$0xf]
    %v113 = vld [vmem:[%s3 + $0x30] sm:$0xf]
    %v114 = vld [vmem:[%s3 + $0x34] sm:$0xf]
    %v115 = vld [vmem:[%s3 + $0x38] sm:$0xf]
    %v116 = vld [vmem:[%s3 + $0x3c] sm:$0xf]
    %v117 = vld [vmem:[%s4] sm:$0x1]
    %v119 = vperm.slane %v117, 0
    %v137 = vunpack.c.l.b16 %v101
    %v138 = vunpack.c.l.b16 %v102
    %v139 = vunpack.c.l.b16 %v103
    %v140 = vunpack.c.l.b16 %v104
    %v141 = vunpack.c.l.b16 %v105
    %v142 = vunpack.c.l.b16 %v106
    %v143 = vunpack.c.l.b16 %v107
    %v144 = vunpack.c.l.b16 %v108
    %v145 = vunpack.c.l.b16 %v109
    %v146 = vunpack.c.l.b16 %v110
    %v147 = vunpack.c.l.b16 %v111
    %v148 = vunpack.c.l.b16 %v112
    %v149 = vunpack.c.l.b16 %v113
    %v150 = vunpack.c.l.b16 %v114
    %v151 = vunpack.c.l.b16 %v115
    %v152 = vunpack.c.l.b16 %v116
    %v153 = vpack.c.b16 %v138, %v137
    %v154 = vpack.c.b16 %v140, %v139
    %v155 = vpack.c.b16 %v142, %v141
    %v156 = vpack.c.b16 %v144, %v143
    %v157 = vpack.c.b16 %v146, %v145
    %v158 = vpack.c.b16 %v148, %v147
    %v159 = vpack.c.b16 %v150, %v149
    %v160 = vpack.c.b16 %v152, %v151
    %169 = vmatpush.bf16.msra.mxu0 %v160
    %170 = vmatpush.bf16.msra.mxu0 %v159
    %171 = vmatpush.bf16.msra.mxu0 %v158
    %172 = vmatpush.bf16.msra.mxu0 %v157
    %173 = vmatpush.bf16.msra.mxu0 %v156
    %174 = vmatpush.bf16.msra.mxu0 %v155
    %175 = vmatpush.bf16.msra.mxu0 %v154
    %176 = vmatpush.bf16.msra.mxu0 %v153
    %177 = vmatmul.bf16.gmra.mxu0 %v100
    %v178 = vpop.f32.mrf.mxu0
    %v179 = vadd.f32 %v119, %v178
    %v180 = vpop.f32.mrf.mxu0
    %181 = vdwg.mxu0
    %v182 = vmax.f32 %v179, 0.0
    %v183 = vpack.c.bf16 %v182, %v182
    %v184 = vld [vmem:[%s5] sm:$0xf]
    %v185 = vld [vmem:[%s5 + $0x4] sm:$0xf]
    %v186 = vld [vmem:[%s5 + $0x8] sm:$0xf]
    %v187 = vld [vmem:[%s5 + $0xc] sm:$0xf]
    %v188 = vld [vmem:[%s5 + $0x10] sm:$0xf]
    %v189 = vld [vmem:[%s5 + $0x14] sm:$0xf]
    %v190 = vld [vmem:[%s5 + $0x18] sm:$0xf]
    %v191 = vld [vmem:[%s5 + $0x1c] sm:$0xf]
    %v192 = vld [vmem:[%s5 + $0x20] sm:$0xf]
    %v193 = vld [vmem:[%s5 + $0x24] sm:$0xf]
    %v194 = vld [vmem:[%s5 + $0x28] sm:$0xf]
    %v195 = vld [vmem:[%s5 + $0x2c] sm:$0xf]
    %v196 = vld [vmem:[%s5 + $0x30] sm:$0xf]
    %v197 = vld [vmem:[%s5 + $0x34] sm:$0xf]
    %v198 = vld [vmem:[%s5 + $0x38] sm:$0xf]
    %v199 = vld [vmem:[%s5 + $0x3c] sm:$0xf]
    %v200 = vld [vmem:[%s6] sm:$0x1]
    %v202 = vperm.slane %v200, 0
    %v220 = vunpack.c.l.b16 %v184
    %v221 = vunpack.c.l.b16 %v185
    %v222 = vunpack.c.l.b16 %v186
    %v223 = vunpack.c.l.b16 %v187
    %v224 = vunpack.c.l.b16 %v188
    %v225 = vunpack.c.l.b16 %v189
    %v226 = vunpack.c.l.b16 %v190
    %v227 = vunpack.c.l.b16 %v191
    %v228 = vunpack.c.l.b16 %v192
    %v229 = vunpack.c.l.b16 %v193
    %v230 = vunpack.c.l.b16 %v194
    %v231 = vunpack.c.l.b16 %v195
    %v232 = vunpack.c.l.b16 %v196
    %v233 = vunpack.c.l.b16 %v197
    %v234 = vunpack.c.l.b16 %v198
    %v235 = vunpack.c.l.b16 %v199
    %v236 = vpack.c.b16 %v221, %v220
    %v237 = vpack.c.b16 %v223, %v222
    %v238 = vpack.c.b16 %v225, %v224
    %v239 = vpack.c.b16 %v227, %v226
    %v240 = vpack.c.b16 %v229, %v228
    %v241 = vpack.c.b16 %v231, %v230
    %v242 = vpack.c.b16 %v233, %v232
    %v243 = vpack.c.b16 %v235, %v234
    %252 = vmatpush.bf16.msra.mxu0 %v243
    %253 = vmatpush.bf16.msra.mxu0 %v242
    %254 = vmatpush.bf16.msra.mxu0 %v241
    %255 = vmatpush.bf16.msra.mxu0 %v240
    %256 = vmatpush.bf16.msra.mxu0 %v239
    %257 = vmatpush.bf16.msra.mxu0 %v238
    %258 = vmatpush.bf16.msra.mxu0 %v237
    %259 = vmatpush.bf16.msra.mxu0 %v236
    %260 = vmatmul.bf16.gmra.mxu0 %v183
    %v261 = vpop.f32.mrf.mxu0
    %v262 = vadd.f32 %v202, %v261
    %v263 = vpop.f32.mrf.mxu0
    %264 = vdwg.mxu0
    %vm265 = vcmask 80896
    %266 = vst.msk [vmem:[#allocation5] sm:$0xff] %vm265, %v262
    // Predicated region
    $region34: #{tpu_custom_call.1} parent=1 // pred_check
      _
    $region35: #{tpu_custom_call.1} parent=1 // pred_check_branch
      %268 = sbr.rel (0) target = $region37
    $region36: #{tpu_custom_call.1} parent=1 // pred_region
      %270 = vsyncadd [#allocation4], 0
      %s272 = sshll.u32 [#allocation5], 4
      %s273 = int_to_ptr.vmem [resolvable:$true] %s272
      %s274 = sshll.u32 %s7, 4
      %s275 = int_to_ptr.hbm [resolvable:$true] %s274
      %277 = dma.vmem_to_hbm [thread:$0]  %s273, 128, %s275, [#allocation4]
    $region37: #{tpu_custom_call.1} parent=1 // pred_fallthru
      _
    // Predicated region
    $region38: #{tpu_custom_call.1} parent=1 // pred_check
      _
    $region39: #{tpu_custom_call.1} parent=1 // pred_check_branch
      %279 = sbr.rel (0) target = $region41
    $region40: #{tpu_custom_call.1} parent=1 // pred_region
      %281 = dma.done [#allocation4], 128
    $region41: #{tpu_custom_call.1} parent=1 // pred_fallthru
      _
    %282 = vsyncpa [#allocation3], 1
    %283 = vsyncpa [#allocation4], 1

</llo_original>
